<compile_context>
chip_gen: v5e
topology: v5e:2x2
jax: 0.10.0
libtpu: 0.0.40
codegen_flags: <defaults>
</compile_context>

<pallas_src>
import functools

import jax
import jax.numpy as jnp
from jax import lax
from jax.experimental import pallas as pl
from jax.experimental.pallas import tpu as pltpu


def _leaky_relu(x, slope=0.01):
    # matches torch.nn.functional.leaky_relu default negative_slope=0.01
    return jnp.where(x > 0, x, slope * x)


def gat_head_kernel(x_ref, adj_ref, w_ref, b_ref, out_ref, acc_ref, *, d):
    """One (row-tile i, reduction-tile k) step of the fused GAT head."""
    k = pl.program_id(1)

    @pl.when(k == 0)
    def _init():
        acc_ref[...] = jnp.zeros_like(acc_ref)

    # Recompute the (cheap) fused projection for this k-chunk of nodes:
    #   cols [0, d)      -> h      = x @ w + b
    #   col  d           -> v_pre  = x @ (w@wa) + (b@wa + ba)   (folded attention proj.)
    #   cols (d, 128)    -> 0      (lane padding)
    h_aug = jnp.dot(x_ref[...], w_ref[...],
                    preferred_element_type=jnp.float32) + b_ref[...]

    # value = leaky_relu(v_pre); value = 20 - leaky_relu(20 - value); value = exp(value)
    v = h_aug[:, d:d + 1]
    v = _leaky_relu(v)
    v = 20.0 - _leaky_relu(20.0 - v)
    v = jnp.exp(v)

    # aug: cols [0, d) = h * v, col d = v, pad cols stay exactly 0.
    col = lax.broadcasted_iota(jnp.int32, h_aug.shape, 1)
    aug = jnp.where(col == d, v, h_aug * v)

    # Single fused adjacency matmul: numerator and normalizer in one MXU pass.
    # bf16 operands (adj is 0/1 -> exact), f32 accumulation.
    acc_ref[...] += jnp.dot(adj_ref[...], aug.astype(jnp.bfloat16),
                            preferred_element_type=jnp.float32)

    @pl.when(k == pl.num_programs(1) - 1)
    def _finalize():
        acc = acc_ref[...]
        divide = acc[:, d:d + 1]
        # guard isolated nodes (all-zero adjacency row) against 0/0
        divide = jnp.maximum(divide, 1e-20)
        out = _leaky_relu(acc * pl.reciprocal(divide, approx=True))
        out_ref[...] = out.astype(out_ref.dtype)


def gat_head(x, adj, w, b, wa, ba, *, tm=128, tk=128):
    N, F_in = x.shape
    D = w.shape[1]
    DP = 128  # lane-dense padded width (cols: [0:D]=h, D=value, rest 0)
    assert D + 1 <= DP, "head width must fit one lane tile alongside the value column"
    assert N % tm == 0 and N % tk == 0  # TODO(synk): pad ragged N to the tile size

    # Fold the [D,1] attention projection into the node projection (exact algebra).
    w_att = w @ wa                      # [F_in, 1]
    b_att = b @ wa + ba                 # [1, 1]
    w_pad = jnp.zeros((F_in, DP), jnp.float32)
    w_pad = w_pad.at[:, :D].set(w).at[:, D:D + 1].set(w_att)
    b_pad = jnp.zeros((1, DP), jnp.float32)
    b_pad = b_pad.at[:, :D].set(b).at[:, D:D + 1].set(b_att)

    # 0/1 adjacency is exact in bf16; halves HBM traffic and VMEM footprint.
    adj_bf16 = adj.astype(jnp.bfloat16)

    n_row_tiles = N // tm
    n_k_tiles = N // tk
    grid = (n_row_tiles, n_k_tiles)

    cost = pl.CostEstimate(
        flops=int(2 * N * N * DP + 2 * n_row_tiles * N * F_in * DP),
        transcendentals=int(n_row_tiles * N),
        bytes_accessed=int(N * N * 2 + n_row_tiles * N * F_in * 4
                           + N * DP * 4 + (F_in + 1) * DP * 4),
    )

    out_pad = pl.pallas_call(
        functools.partial(gat_head_kernel, d=D),
        out_shape=jax.ShapeDtypeStruct((N, DP), jnp.float32),
        grid_spec=pltpu.PrefetchScalarGridSpec(
            num_scalar_prefetch=0,
            grid=grid,
            in_specs=[
                pl.BlockSpec((tk, F_in), lambda i, k: (k, 0)),   # x chunk (by k)
                pl.BlockSpec((tm, tk), lambda i, k: (i, k)),     # adj tile
                pl.BlockSpec((F_in, DP), lambda i, k: (0, 0)),   # fused weights
                pl.BlockSpec((1, DP), lambda i, k: (0, 0)),      # fused bias
            ],
            out_specs=pl.BlockSpec((tm, DP), lambda i, k: (i, 0)),
            scratch_shapes=[pltpu.VMEM((tm, DP), jnp.float32)],
        ),
        compiler_params=pltpu.CompilerParams(
            dimension_semantics=("parallel", "arbitrary")),
        cost_estimate=cost,
    )(x, adj_bf16, w_pad, b_pad)

    # drop the lane padding (cols [D:] hold the normalizer column + zeros)
    return out_pad[:, :D]


def gat_head_reference(x, adj, w, b, wa, ba):
    h = x @ w + b
    v = h @ wa + ba
    v = _leaky_relu(v)
    v = 20.0 - _leaky_relu(20.0 - v)
    v = jnp.exp(v)
    divide = adj @ v
    out = (adj @ (h * v)) / divide
    return _leaky_relu(out)


if __name__ == "__main__":
    N, F_IN, D = 256, 64, 32   # small shapes; grid = (2, 2) exercises the accumulator

    key = jax.random.PRNGKey(0)
    kx, kadj, kw, kb, kwa, kba = jax.random.split(key, 6)

    x = jax.random.normal(kx, (N, F_IN), dtype=jnp.float32)

    # random sparse-ish adjacency (dense storage) with self-loops so no node has
    # an empty neighbourhood (matches the torch usage; avoids 0/0).
    adj = (jax.random.uniform(kadj, (N, N)) < 0.1).astype(jnp.float32)
    adj = jnp.clip(adj + jnp.eye(N, dtype=jnp.float32), 0.0, 1.0)

    # deterministic parameter init (synthetic, analogous to nn.Linear shapes)
    w = jax.random.normal(kw, (F_IN, D), dtype=jnp.float32) * 0.1    # ll.weight.T
    b = jax.random.normal(kb, (1, D), dtype=jnp.float32) * 0.1       # ll.bias
    wa = jax.random.normal(kwa, (D, 1), dtype=jnp.float32) * 0.1     # ll_att.weight.T
    ba = jax.random.normal(kba, (1, 1), dtype=jnp.float32) * 0.1     # ll_att.bias

    out = gat_head(x, adj, w, b, wa, ba)
    out = jax.block_until_ready(out)

    ref = gat_head_reference(x, adj, w, b, wa, ba)
    assert out.shape == (N, D)
    # tolerance loosened vs the pure-f32 reference: bf16 MXU operands + approx
    # reciprocal (observed error ~1e-3, well under 2e-2).
    assert jnp.allclose(out, ref, atol=2e-2, rtol=2e-2), "mismatch vs reference"

    print("KERNEL_OK")
</pallas_src>

<mosaic_0001>
module attributes {stable_mosaic.version = 11 : i64} {
  func.func @gat_head_kernel(%arg0: i32, %arg1: i32, %arg2: memref<128x64xf32, #tpu.memory_space<vmem>>, %arg3: memref<128x128xbf16, #tpu.memory_space<vmem>>, %arg4: memref<64x128xf32, #tpu.memory_space<vmem>>, %arg5: memref<1x128xf32, #tpu.memory_space<vmem>>, %arg6: memref<128x128xf32, #tpu.memory_space<vmem>>, %arg7: memref<128x128xf32, #tpu.memory_space<vmem>>) attributes {dimension_semantics = [#tpu.dimension_semantics<parallel>, #tpu.dimension_semantics<arbitrary>], iteration_bounds = array<i64: 2, 2>, scalar_prefetch = 0 : i64, scratch_operands = 1 : i64, tpu.core_type = #tpu.core_type<tc>, window_params = [{transform_indices = @transform_0, window_bounds = array<i64: 128, 64>}, {transform_indices = @transform_1, window_bounds = array<i64: 128, 128>}, {pipeline_mode = #tpu.pipeline_mode<synchronous>, transform_indices = @transform_2, window_bounds = array<i64: 64, 128>}, {pipeline_mode = #tpu.pipeline_mode<synchronous>, transform_indices = @transform_3, window_bounds = array<i64: 1, 128>}, {transform_indices = @transform_4, window_bounds = array<i64: 128, 128>}]} {
    %c0_i32 = arith.constant 0 : i32
    %0 = arith.cmpi eq, %arg1, %c0_i32 : i32
    %1 = arith.extui %0 : i1 to i32
    %c0_i32_0 = arith.constant 0 : i32
    %2 = arith.cmpi ne, %1, %c0_i32_0 : i32
    scf.if %2 {
      %cst_20 = arith.constant 0.000000e+00 : f32
      %42 = vector.broadcast %cst_20 : f32 to vector<128x128xf32>
      %c0_21 = arith.constant 0 : index
      %c0_22 = arith.constant 0 : index
      %43 = vector.load %arg7[%c0_21, %c0_22] : memref<128x128xf32, #tpu.memory_space<vmem>>, vector<128x128xf32>
      tpu.vector_store %arg7[%c0_21, %c0_22], %42 {strides = array<i32>} : memref<128x128xf32, #tpu.memory_space<vmem>>, vector<128x128xf32>,
    } else {
    }
    %c0 = arith.constant 0 : index
    %c0_1 = arith.constant 0 : index
    %3 = vector.load %arg2[%c0, %c0_1] : memref<128x64xf32, #tpu.memory_space<vmem>>, vector<128x64xf32>
    %c0_2 = arith.constant 0 : index
    %c0_3 = arith.constant 0 : index
    %4 = vector.load %arg4[%c0_2, %c0_3] : memref<64x128xf32, #tpu.memory_space<vmem>>, vector<64x128xf32>
    %cst = arith.constant dense<0.000000e+00> : vector<128x128xf32>
    %5 = tpu.matmul %3, %4, %cst {dimension_numbers = #tpu.dot_dimension_numbers<[1], [0], [0], [1], [0, 0, 1, 1], [], []>} : vector<128x64xf32>, vector<64x128xf32>, vector<128x128xf32> -> vector<128x128xf32>
    %c0_4 = arith.constant 0 : index
    %c0_5 = arith.constant 0 : index
    %6 = vector.load %arg5[%c0_4, %c0_5] : memref<1x128xf32, #tpu.memory_space<vmem>>, vector<1x128xf32>
    %7 = vector.broadcast %6 : vector<1x128xf32> to vector<128x128xf32>
    %8 = arith.addf %5, %7 : vector<128x128xf32>
    %9 = vector.extract_strided_slice %8 {offsets = [0, 32], sizes = [128, 1], strides = [1, 1]} : vector<128x128xf32> to vector<128x1xf32>
    %cst_6 = arith.constant 0.000000e+00 : f32
    %10 = vector.broadcast %cst_6 : f32 to vector<128x1xf32>
    %11 = arith.cmpf ogt, %9, %10 : vector<128x1xf32>
    %cst_7 = arith.constant 0.00999999977 : f32
    %12 = vector.broadcast %cst_7 : f32 to vector<128x1xf32>
    %13 = arith.mulf %12, %9 : vector<128x1xf32>
    %14 = arith.select %11, %9, %13 : vector<128x1xi1>, vector<128x1xf32>
    %cst_8 = arith.constant 2.000000e+01 : f32
    %15 = vector.broadcast %cst_8 : f32 to vector<128x1xf32>
    %16 = arith.subf %15, %14 : vector<128x1xf32>
    %cst_9 = arith.constant 0.000000e+00 : f32
    %17 = vector.broadcast %cst_9 : f32 to vector<128x1xf32>
    %18 = arith.cmpf ogt, %16, %17 : vector<128x1xf32>
    %cst_10 = arith.constant 0.00999999977 : f32
    %19 = vector.broadcast %cst_10 : f32 to vector<128x1xf32>
    %20 = arith.mulf %19, %16 : vector<128x1xf32>
    %21 = arith.select %18, %16, %20 : vector<128x1xi1>, vector<128x1xf32>
    %cst_11 = arith.constant 2.000000e+01 : f32
    %22 = vector.broadcast %cst_11 : f32 to vector<128x1xf32>
    %23 = arith.subf %22, %21 : vector<128x1xf32>
    %24 = math.exp %23 : vector<128x1xf32>
    %25 = tpu.iota {dimensions = array<i32: 1>} : vector<128x128xi32>
    %c32_i32 = arith.constant 32 : i32
    %26 = vector.broadcast %c32_i32 : i32 to vector<128x128xi32>
    %27 = arith.cmpi eq, %25, %26 : vector<128x128xi32>
    %28 = vector.broadcast %24 : vector<128x1xf32> to vector<128x128xf32>
    %29 = arith.mulf %8, %28 : vector<128x128xf32>
    %30 = vector.shape_cast %24 : vector<128x1xf32> to vector<128x1xf32>
    %31 = vector.broadcast %30 : vector<128x1xf32> to vector<128x128xf32>
    %32 = arith.select %27, %31, %29 : vector<128x128xi1>, vector<128x128xf32>
    %c0_12 = arith.constant 0 : index
    %c0_13 = arith.constant 0 : index
    %33 = vector.load %arg7[%c0_12, %c0_13] : memref<128x128xf32, #tpu.memory_space<vmem>>, vector<128x128xf32>
    %c0_14 = arith.constant 0 : index
    %c0_15 = arith.constant 0 : index
    %34 = vector.load %arg3[%c0_14, %c0_15] : memref<128x128xbf16, #tpu.memory_space<vmem>>, vector<128x128xbf16>
    %35 = arith.truncf %32 : vector<128x128xf32> to vector<128x128xbf16>
    %cst_16 = arith.constant dense<0.000000e+00> : vector<128x128xf32>
    %36 = tpu.matmul %34, %35, %cst_16 {dimension_numbers = #tpu.dot_dimension_numbers<[1], [0], [0], [1], [0, 0, 1, 1], [], []>} : vector<128x128xbf16>, vector<128x128xbf16>, vector<128x128xf32> -> vector<128x128xf32>
    %37 = arith.addf %33, %36 : vector<128x128xf32>
    %c0_17 = arith.constant 0 : index
    %c0_18 = arith.constant 0 : index
    %38 = vector.load %arg7[%c0_17, %c0_18] : memref<128x128xf32, #tpu.memory_space<vmem>>, vector<128x128xf32>
    tpu.vector_store %arg7[%c0_17, %c0_18], %37 {strides = array<i32>} : memref<128x128xf32, #tpu.memory_space<vmem>>, vector<128x128xf32>,
    %c1_i32 = arith.constant 1 : i32
    %39 = arith.cmpi eq, %arg1, %c1_i32 : i32
    %40 = arith.extui %39 : i1 to i32
    %c0_i32_19 = arith.constant 0 : i32
    %41 = arith.cmpi ne, %40, %c0_i32_19 : i32
    scf.if %41 {
      %c0_20 = arith.constant 0 : index
      %c0_21 = arith.constant 0 : index
      %42 = vector.load %arg7[%c0_20, %c0_21] : memref<128x128xf32, #tpu.memory_space<vmem>>, vector<128x128xf32>
      %43 = vector.extract_strided_slice %42 {offsets = [0, 32], sizes = [128, 1], strides = [1, 1]} : vector<128x128xf32> to vector<128x1xf32>
      %cst_22 = arith.constant 9.99999968E-21 : f32
      %44 = vector.broadcast %cst_22 : f32 to vector<128x1xf32>
      %45 = arith.maximumf %43, %44 : vector<128x1xf32>
      %46 = tpu.reciprocal %45 {approx = true} : vector<128x1xf32> -> vector<128x1xf32>
      %47 = vector.broadcast %46 : vector<128x1xf32> to vector<128x128xf32>
      %48 = arith.mulf %42, %47 : vector<128x128xf32>
      %cst_23 = arith.constant 0.000000e+00 : f32
      %49 = vector.broadcast %cst_23 : f32 to vector<128x128xf32>
      %50 = arith.cmpf ogt, %48, %49 : vector<128x128xf32>
      %cst_24 = arith.constant 0.00999999977 : f32
      %51 = vector.broadcast %cst_24 : f32 to vector<128x128xf32>
      %52 = arith.mulf %51, %48 : vector<128x128xf32>
      %53 = arith.select %50, %48, %52 : vector<128x128xi1>, vector<128x128xf32>
      %c0_25 = arith.constant 0 : index
      %c0_26 = arith.constant 0 : index
      %54 = vector.load %arg6[%c0_25, %c0_26] : memref<128x128xf32, #tpu.memory_space<vmem>>, vector<128x128xf32>
      tpu.vector_store %arg6[%c0_25, %c0_26], %53 {strides = array<i32>} : memref<128x128xf32, #tpu.memory_space<vmem>>, vector<128x128xf32>,
    } else {
    }
    return
  }
  func.func @transform_0(%arg0: i32, %arg1: i32) -> (i32, i32) {
    %c0_i32 = arith.constant 0 : i32
    %c0_i32_0 = arith.constant 0 : i32
    return %arg1, %c0_i32 : i32, i32
  }
  func.func @transform_1(%arg0: i32, %arg1: i32) -> (i32, i32) {
    %c0_i32 = arith.constant 0 : i32
    return %arg0, %arg1 : i32, i32
  }
  func.func @transform_2(%arg0: i32, %arg1: i32) -> (i32, i32) {
    %c0_i32 = arith.constant 0 : i32
    %c0_i32_0 = arith.constant 0 : i32
    %c0_i32_1 = arith.constant 0 : i32
    return %c0_i32, %c0_i32_0 : i32, i32
  }
  func.func @transform_3(%arg0: i32, %arg1: i32) -> (i32, i32) {
    %c0_i32 = arith.constant 0 : i32
    %c0_i32_0 = arith.constant 0 : i32
    %c0_i32_1 = arith.constant 0 : i32
    return %c0_i32, %c0_i32_0 : i32, i32
  }
  func.func @transform_4(%arg0: i32, %arg1: i32) -> (i32, i32) {
    %c0_i32 = arith.constant 0 : i32
    %c0_i32_0 = arith.constant 0 : i32
    return %arg0, %c0_i32 : i32, i32
  }
}

</mosaic_0001>

<llo_original>
// kernel: tpu_custom_call.1
$region0: #{tpu_custom_call.1}
  #allocation0 [shape = 'u32[]', space=smem, size = 0x4, offset = 0x4, fixed_abs, tag = 'smem constant byte address 0x4 - core index']
  #allocation1 [shape = 'u32[72,128]{1,0:T(1,128)}', space=vmem, size = 0x9000, scoped, tag = 'internal scratch']
  #allocation2 [shape = 'f32[128,128]{1,0:T(8,128)}', space=vmem, size = 0x10000, scoped, tag = 'scratch operand']
  %s0 = inlined_call_operand.vmem [shape: f32[256,64], index: 0, kind: input, shape index: {}]
  %s1 = inlined_call_operand.vmem [shape: bf16[256,256], index: 1, kind: input, shape index: {}]
  %s2 = inlined_call_operand.vmem [shape: f32[64,128], index: 2, kind: input, shape index: {}]
  %s3 = inlined_call_operand.vmem [shape: f32[1,128], index: 3, kind: input, shape index: {}]
  %s4 = inlined_call_operand.hbm [shape: f32[256,128], index: 4, kind: output, shape index: {}]
  %s5 = sld [smem:[#allocation0]]
  $region98: #{tpu_custom_call.1} parent=0
    _
  %s7 = ssub.s32 1, %s5
  %s8 = scalar_select 0, %s7, %s5
  $region1: #{tpu_custom_call.1} parent=0
    #allocation3 [shape = 'u8[65536]{0}', space=vmem, size = 0x10000, scoped, tag = 'input window, operand 1']
    #allocation4 [shape = 'u8[131072]{0}', space=vmem, size = 0x20000, scoped, tag = 'output window, operand 0']
    #allocation5 [shape = 's32[2]{0}', space=sflag, size = 0x8, scoped, tag = 'scoped memory for tpu_custom_call.1']
    %9 = vsyncpa [#allocation5], 0
    %s10 = scalar_lea.sflag [#allocation5], 1
    %11 = vsyncpa %s10, 0
    loop: start=0, step=1, limit=6
    $region2: #{tpu_custom_call.1} parent=1 // loop_pre_header
      _
    $region3: #{tpu_custom_call.1} parent=1 // loop_header
      %s13 = sphi 0, %s17
      %p14 = scmp.ge.s32.totalorder %s13, 6
      %s20 = sphi 0, %s32
      %s21 = sphi 0, %s28
      %s22 = sphi 0, %s20
      %s23 = sphi 0, %s21
      %s24 = sphi 0, %s22
      %s25 = sphi 0, %s23
      %s35 = sphi 0, %s37
      %s38 = sphi 0, %s35
      %s39 = sphi 0, %s38
      %s55 = sphi 0, %s39
      %s63 = sphi 0, %s65
      %s66 = sphi 0, %s63
      %s67 = sphi 0, %s66
      %s83 = sphi 0, %s67
      %s87 = sphi 0, %s87
      %s89 = sphi 0, %s87
      %s90 = sphi 0, %s89
      %s104 = sphi 0, %s90
      %s108 = sphi 0, %s108
      %s110 = sphi 0, %s108
      %s111 = sphi 0, %s110
      %s125 = sphi 0, %s111
      %s131 = sphi 0, %s133
      %s134 = sphi 0, %s131
      %s135 = sphi 0, %s134
      %s151 = sphi 0, %s135
    $region4: #{tpu_custom_call.1} parent=1 // loop_header_branch
      %16 = sbr.rel (%p14) target = $region8
    $region5: #{tpu_custom_call.1} parent=1 // loop_body
      %s18 = ssub.s32 %s13, 1
      %s19 = ssub.s32 %s13, 2
      %s26 = sadd.s32 1, %s21
      %p27 = scmp.ge.s32.totalorder %s26, 2
      %s28 = scalar_select %p27, 0, %s26
      %s29 = sadd.s32 1, %s20
      %s30 = scalar_select %p27, %s29, %s20
      %p31 = scmp.ge.s32.totalorder %s30, 2
      %s32 = scalar_select %p31, 0, %s30
      %s33 = ssub.s32 %s21, %s28
      %p34 = scmp.eq.s32.totalorder %s33, 0
      %s36 = sadd.s32 %s35, 1
      %s37 = scalar_select %p34, %s35, %s36
      %p40 = pneg %p34
      %p41 = scmp.eq.s32.totalorder %s13, 3
      %p42 = por %p40, %p41
      %p43 = scmp.ne.s32.totalorder %s35, %s38
      %p44 = scmp.eq.s32.totalorder %s13, 0
      %p45 = por %p43, %p44
      %p46 = scmp.ne.s32.totalorder %s35, %s38
      %p47 = scmp.eq.s32.totalorder %s18, 3
      %p48 = por %p46, %p47
      %p49 = scmp.ne.s32.totalorder %s38, %s39
      %p50 = scmp.eq.s32.totalorder %s18, 0
      %p51 = por %p49, %p50
      %p52 = scmp.ne.s32.totalorder %s38, %s39
      %p53 = scmp.eq.s32.totalorder %s19, 3
      %p54 = por %p52, %p53
      %p56 = scmp.ne.s32.totalorder %s39, %s55
      %p57 = scmp.eq.s32.totalorder %s19, 0
      %p58 = por %p56, %p57
      %s59 = ssub.s32 %s20, %s32
      %s60 = ssub.s32 %s21, %s28
      %s61 = sor.u32 %s59, %s60
      %p62 = scmp.eq.s32.totalorder %s61, 0
      %s64 = sadd.s32 %s63, 1
      %s65 = scalar_select %p62, %s63, %s64
      %p68 = pneg %p62
      %p69 = scmp.eq.s32.totalorder %s13, 3
      %p70 = por %p68, %p69
      %p71 = scmp.ne.s32.totalorder %s63, %s66
      %p72 = scmp.eq.s32.totalorder %s13, 0
      %p73 = por %p71, %p72
      %p74 = scmp.ne.s32.totalorder %s63, %s66
      %p75 = scmp.eq.s32.totalorder %s18, 3
      %p76 = por %p74, %p75
      %p77 = scmp.ne.s32.totalorder %s66, %s67
      %p78 = scmp.eq.s32.totalorder %s18, 0
      %p79 = por %p77, %p78
      %p80 = scmp.ne.s32.totalorder %s66, %s67
      %p81 = scmp.eq.s32.totalorder %s19, 3
      %p82 = por %p80, %p81
      %p84 = scmp.ne.s32.totalorder %s67, %s83
      %p85 = scmp.eq.s32.totalorder %s19, 0
      %p86 = por %p84, %p85
      %s88 = sadd.s32 %s87, 1
      %p91 = scmp.eq.s32.totalorder %s13, 3
      %p92 = scmp.ne.s32.totalorder %s87, %s89
      %p93 = scmp.eq.s32.totalorder %s13, 0
      %p94 = por %p92, %p93
      %p95 = scmp.ne.s32.totalorder %s87, %s89
      %p96 = scmp.eq.s32.totalorder %s18, 3
      %p97 = por %p95, %p96
      %p98 = scmp.ne.s32.totalorder %s89, %s90
      %p99 = scmp.eq.s32.totalorder %s18, 0
      %p100 = por %p98, %p99
      %p101 = scmp.ne.s32.totalorder %s89, %s90
      %p102 = scmp.eq.s32.totalorder %s19, 3
      %p103 = por %p101, %p102
      %p105 = scmp.ne.s32.totalorder %s90, %s104
      %p106 = scmp.eq.s32.totalorder %s19, 0
      %p107 = por %p105, %p106
      %s109 = sadd.s32 %s108, 1
      %p112 = scmp.eq.s32.totalorder %s13, 3
      %p113 = scmp.ne.s32.totalorder %s108, %s110
      %p114 = scmp.eq.s32.totalorder %s13, 0
      %p115 = por %p113, %p114
      %p116 = scmp.ne.s32.totalorder %s108, %s110
      %p117 = scmp.eq.s32.totalorder %s18, 3
      %p118 = por %p116, %p117
      %p119 = scmp.ne.s32.totalorder %s110, %s111
      %p120 = scmp.eq.s32.totalorder %s18, 0
      %p121 = por %p119, %p120
      %p122 = scmp.ne.s32.totalorder %s110, %s111
      %p123 = scmp.eq.s32.totalorder %s19, 3
      %p124 = por %p122, %p123
      %p126 = scmp.ne.s32.totalorder %s111, %s125
      %p127 = scmp.eq.s32.totalorder %s19, 0
      %p128 = por %p126, %p127
      %s129 = ssub.s32 %s20, %s32
      %p130 = scmp.eq.s32.totalorder %s129, 0
      %s132 = sadd.s32 %s131, 1
      %s133 = scalar_select %p130, %s131, %s132
      %p136 = pneg %p130
      %p137 = scmp.eq.s32.totalorder %s13, 3
      %p138 = por %p136, %p137
      %p139 = scmp.ne.s32.totalorder %s131, %s134
      %p140 = scmp.eq.s32.totalorder %s13, 0
      %p141 = por %p139, %p140
      %p142 = scmp.ne.s32.totalorder %s131, %s134
      %p143 = scmp.eq.s32.totalorder %s18, 3
      %p144 = por %p142, %p143
      %p145 = scmp.ne.s32.totalorder %s134, %s135
      %p146 = scmp.eq.s32.totalorder %s18, 0
      %p147 = por %p145, %p146
      %p148 = scmp.ne.s32.totalorder %s134, %s135
      %p149 = scmp.eq.s32.totalorder %s19, 3
      %p150 = por %p148, %p149
      %p152 = scmp.ne.s32.totalorder %s135, %s151
      %p153 = scmp.eq.s32.totalorder %s19, 0
      %p154 = por %p152, %p153
      %p155 = scmp.le.s32.totalorder 1, %s13
      %p156 = scmp.lt.s32.totalorder %s13, 5
      %p157 = pnand %p155, %p156
      %p158 = pneg %p157
      // Predicated region
      $region9: #{tpu_custom_call.1} parent=5 // pred_check
        _
      $region10: #{tpu_custom_call.1} parent=5 // pred_check_branch
        %160 = sbr.rel (%p157) target = $region12
      $region11: #{tpu_custom_call.1} parent=5 // pred_region
        %s161 = ssub.s32 %s13, 1
        // Predicated region
        $region13: #{tpu_custom_call.1} parent=11 // pred_check
          %p162 = pneg %p100
        $region14: #{tpu_custom_call.1} parent=11 // pred_check_branch
          %164 = sbr.rel (%p162) target = $region16
        $region15: #{tpu_custom_call.1} parent=11 // pred_region
          _
        $region16: #{tpu_custom_call.1} parent=11 // pred_fallthru
          _
        // Predicated region
        $region17: #{tpu_custom_call.1} parent=11 // pred_check
          %p165 = pneg %p121
        $region18: #{tpu_custom_call.1} parent=11 // pred_check_branch
          %167 = sbr.rel (%p165) target = $region20
        $region19: #{tpu_custom_call.1} parent=11 // pred_region
          _
        $region20: #{tpu_custom_call.1} parent=11 // pred_fallthru
          _
      $region12: #{tpu_custom_call.1} parent=5 // pred_fallthru
        _
      %p168 = scmp.lt.s32.totalorder %s13, 4
      // Predicated region
      $region21: #{tpu_custom_call.1} parent=5 // pred_check
        %p169 = pneg %p168
      $region22: #{tpu_custom_call.1} parent=5 // pred_check_branch
        %171 = sbr.rel (%p169) target = $region24
      $region23: #{tpu_custom_call.1} parent=5 // pred_region
        // Predicated region
        $region25: #{tpu_custom_call.1} parent=23 // pred_check
          %p172 = pneg %p45
        $region26: #{tpu_custom_call.1} parent=23 // pred_check_branch
          %174 = sbr.rel (%p172) target = $region28
        $region27: #{tpu_custom_call.1} parent=23 // pred_region
          %s175 = smul.u32 16, %s21
          %p176 = scmp.lt.s32.totalorder %s175, 31
          %s177 = scalar_select %p176, %s175, 31
          %s178 = smul.addr %s177, 8
          %s179 = scalar_lea.vmem %s0, %s178
          %s180 = smul.u32 16, %s21
        $region28: #{tpu_custom_call.1} parent=23 // pred_fallthru
          _
        // Predicated region
        $region29: #{tpu_custom_call.1} parent=23 // pred_check
          %p181 = pneg %p73
        $region30: #{tpu_custom_call.1} parent=23 // pred_check_branch
          %183 = sbr.rel (%p181) target = $region32
        $region31: #{tpu_custom_call.1} parent=23 // pred_region
          %s184 = sand.u32 %s63, 1
          %s185 = sand.u32 %s63, 1
          %s186 = smul.addr %s185, 64
          %s187 = scalar_lea.vmem [#allocation3], %s186
          %s188 = smul.u32 16, %s20
          %s189 = smul.addr %s188, 2
          %s190 = sadd.s32 %s21, %s189
          %s191 = smul.addr %s190, 4
          %s192 = scalar_lea.vmem %s1, %s191
          // Predicated region
          $region33: #{tpu_custom_call.1} parent=31 // pred_check
            _
          $region34: #{tpu_custom_call.1} parent=31 // pred_check_branch
            %194 = sbr.rel (0) target = $region36
          $region35: #{tpu_custom_call.1} parent=31 // pred_region
            // Predicated region
            $region37: #{tpu_custom_call.1} parent=35 // pred_check
              _
            $region38: #{tpu_custom_call.1} parent=35 // pred_check_branch
              %196 = sbr.rel target = $region40
            $region39: #{tpu_custom_call.1} parent=35 // pred_region
              // Predicated region
              $region52: #{tpu_custom_call.1} parent=39 // pred_check
                _
              $region53: #{tpu_custom_call.1} parent=39 // pred_check_branch
                %242 = sbr.rel (0) target = $region55
              $region54: #{tpu_custom_call.1} parent=39 // pred_region
                loop: start=0, step=1, limit=1
                $region56: #{tpu_custom_call.1} parent=54 // loop_pre_header
                  _
                $region57: #{tpu_custom_call.1} parent=54 // loop_header
                  %s244 = sphi 0, %s248
                  %p245 = scmp.ge.s32.totalorder %s244, 1
                  %s249 = sphi %s192, %s192
                  %s250 = sphi %s187, %s187
                $region58: #{tpu_custom_call.1} parent=54 // loop_header_branch
                  %247 = sbr.rel (%p245) target = $region62
                $region59: #{tpu_custom_call.1} parent=54 // loop_body
                  _
                $region60: #{tpu_custom_call.1} parent=54 // loop_footer
                  %s248 = sadd.s32 1, %s244
                $region61: #{tpu_custom_call.1} parent=54 // loop_footer_branch
                  %243 = sbr.rel target = $region57
                $region62: #{tpu_custom_call.1} parent=54 // loop_exit
                  _
                %s252 = ssub.s32 16, 1
                loop: start=0, step=1, limit=1
                $region63: #{tpu_custom_call.1} parent=54 // loop_pre_header
                  _
                $region64: #{tpu_custom_call.1} parent=54 // loop_header
                  %s254 = sphi 0, %s258
                  %p255 = scmp.ge.s32.totalorder %s254, 1
                  %s259 = sphi %s192, %s192
                  %s260 = sphi %s187, %s187
                $region65: #{tpu_custom_call.1} parent=54 // loop_header_branch
                  %257 = sbr.rel (%p255) target = $region69
                $region66: #{tpu_custom_call.1} parent=54 // loop_body
                  %v261 = vld [vmem:[%s259] sm:%s252]
                  %262 = vst [vmem:[%s260] sm:%s252] %v261
                  %v263 = vld [vmem:[%s259 + $0x8] sm:%s252]
                  %264 = vst [vmem:[%s260 + $0x4] sm:%s252] %v263
                  %v265 = vld [vmem:[%s259 + $0x10] sm:%s252]
                  %266 = vst [vmem:[%s260 + $0x8] sm:%s252] %v265
                  %v267 = vld [vmem:[%s259 + $0x18] sm:%s252]
                  %268 = vst [vmem:[%s260 + $0xc] sm:%s252] %v267
                  %v269 = vld [vmem:[%s259 + $0x20] sm:%s252]
                  %270 = vst [vmem:[%s260 + $0x10] sm:%s252] %v269
                  %v271 = vld [vmem:[%s259 + $0x28] sm:%s252]
                  %272 = vst [vmem:[%s260 + $0x14] sm:%s252] %v271
                  %v273 = vld [vmem:[%s259 + $0x30] sm:%s252]
                  %274 = vst [vmem:[%s260 + $0x18] sm:%s252] %v273
                  %v275 = vld [vmem:[%s259 + $0x38] sm:%s252]
                  %276 = vst [vmem:[%s260 + $0x1c] sm:%s252] %v275
                  %v277 = vld [vmem:[%s259 + $0x40] sm:%s252]
                  %278 = vst [vmem:[%s260 + $0x20] sm:%s252] %v277
                  %v279 = vld [vmem:[%s259 + $0x48] sm:%s252]
                  %280 = vst [vmem:[%s260 + $0x24] sm:%s252] %v279
                  %v281 = vld [vmem:[%s259 + $0x50] sm:%s252]
                  %282 = vst [vmem:[%s260 + $0x28] sm:%s252] %v281
                  %v283 = vld [vmem:[%s259 + $0x58] sm:%s252]
                  %284 = vst [vmem:[%s260 + $0x2c] sm:%s252] %v283
                  %v285 = vld [vmem:[%s259 + $0x60] sm:%s252]
                  %286 = vst [vmem:[%s260 + $0x30] sm:%s252] %v285
                  %v287 = vld [vmem:[%s259 + $0x68] sm:%s252]
                  %288 = vst [vmem:[%s260 + $0x34] sm:%s252] %v287
                  %v289 = vld [vmem:[%s259 + $0x70] sm:%s252]
                  %290 = vst [vmem:[%s260 + $0x38] sm:%s252] %v289
                  %v291 = vld [vmem:[%s259 + $0x78] sm:%s252]
                  %292 = vst [vmem:[%s260 + $0x3c] sm:%s252] %v291
                $region67: #{tpu_custom_call.1} parent=54 // loop_footer
                  %s258 = sadd.s32 1, %s254
                $region68: #{tpu_custom_call.1} parent=54 // loop_footer_branch
                  %253 = sbr.rel target = $region64
                $region69: #{tpu_custom_call.1} parent=54 // loop_exit
                  _
              $region55: #{tpu_custom_call.1} parent=39 // pred_fallthru
                _
            $region40: #{tpu_custom_call.1} parent=35 // pred_fallthru
              _
            // Predicated region
            $region41: #{tpu_custom_call.1} parent=35 // pred_check
              _
            $region42: #{tpu_custom_call.1} parent=35 // pred_check_branch
              %198 = sbr.rel (0) target = $region44
            $region43: #{tpu_custom_call.1} parent=35 // pred_region
              %s200 = ssub.s32 16, 1
              loop: start=0, step=1, limit=1
              $region45: #{tpu_custom_call.1} parent=43 // loop_pre_header
                _
              $region46: #{tpu_custom_call.1} parent=43 // loop_header
                %s202 = sphi 0, %s206
                %p203 = scmp.ge.s32.totalorder %s202, 1
                %s207 = sphi %s192, %s192
                %s208 = sphi %s187, %s187
              $region47: #{tpu_custom_call.1} parent=43 // loop_header_branch
                %205 = sbr.rel (%p203) target = $region51
              $region48: #{tpu_custom_call.1} parent=43 // loop_body
                %v209 = vld [vmem:[%s207] sm:%s200]
                %210 = vst [vmem:[%s208] sm:%s200] %v209
                %v211 = vld [vmem:[%s207 + $0x8] sm:%s200]
                %212 = vst [vmem:[%s208 + $0x4] sm:%s200] %v211
                %v213 = vld [vmem:[%s207 + $0x10] sm:%s200]
                %214 = vst [vmem:[%s208 + $0x8] sm:%s200] %v213
                %v215 = vld [vmem:[%s207 + $0x18] sm:%s200]
                %216 = vst [vmem:[%s208 + $0xc] sm:%s200] %v215
                %v217 = vld [vmem:[%s207 + $0x20] sm:%s200]
                %218 = vst [vmem:[%s208 + $0x10] sm:%s200] %v217
                %v219 = vld [vmem:[%s207 + $0x28] sm:%s200]
                %220 = vst [vmem:[%s208 + $0x14] sm:%s200] %v219
                %v221 = vld [vmem:[%s207 + $0x30] sm:%s200]
                %222 = vst [vmem:[%s208 + $0x18] sm:%s200] %v221
                %v223 = vld [vmem:[%s207 + $0x38] sm:%s200]
                %224 = vst [vmem:[%s208 + $0x1c] sm:%s200] %v223
                %v225 = vld [vmem:[%s207 + $0x40] sm:%s200]
                %226 = vst [vmem:[%s208 + $0x20] sm:%s200] %v225
                %v227 = vld [vmem:[%s207 + $0x48] sm:%s200]
                %228 = vst [vmem:[%s208 + $0x24] sm:%s200] %v227
                %v229 = vld [vmem:[%s207 + $0x50] sm:%s200]
                %230 = vst [vmem:[%s208 + $0x28] sm:%s200] %v229
                %v231 = vld [vmem:[%s207 + $0x58] sm:%s200]
                %232 = vst [vmem:[%s208 + $0x2c] sm:%s200] %v231
                %v233 = vld [vmem:[%s207 + $0x60] sm:%s200]
                %234 = vst [vmem:[%s208 + $0x30] sm:%s200] %v233
                %v235 = vld [vmem:[%s207 + $0x68] sm:%s200]
                %236 = vst [vmem:[%s208 + $0x34] sm:%s200] %v235
                %v237 = vld [vmem:[%s207 + $0x70] sm:%s200]
                %238 = vst [vmem:[%s208 + $0x38] sm:%s200] %v237
                %v239 = vld [vmem:[%s207 + $0x78] sm:%s200]
                %240 = vst [vmem:[%s208 + $0x3c] sm:%s200] %v239
              $region49: #{tpu_custom_call.1} parent=43 // loop_footer
                %s206 = sadd.s32 1, %s202
              $region50: #{tpu_custom_call.1} parent=43 // loop_footer_branch
                %201 = sbr.rel target = $region46
              $region51: #{tpu_custom_call.1} parent=43 // loop_exit
                _
            $region44: #{tpu_custom_call.1} parent=35 // pred_fallthru
              _
          $region36: #{tpu_custom_call.1} parent=31 // pred_fallthru
            _
          %293 = vnop
        $region32: #{tpu_custom_call.1} parent=23 // pred_fallthru
          _
      $region24: #{tpu_custom_call.1} parent=5 // pred_fallthru
        _
      %p294 = scmp.le.s32.totalorder 1, %s13
      %p295 = scmp.lt.s32.totalorder %s13, 5
      %p296 = pnand %p294, %p295
      %p297 = pneg %p296
      // Predicated region
      $region70: #{tpu_custom_call.1} parent=5 // pred_check
        _
      $region71: #{tpu_custom_call.1} parent=5 // pred_check_branch
        %299 = sbr.rel (%p296) target = $region73
      $region72: #{tpu_custom_call.1} parent=5 // pred_region
        %s300 = ssub.s32 %s13, 1
        %s301 = sand.u32 %s66, 1
        %s302 = sand.u32 %s66, 1
        %s303 = smul.addr %s302, 64
        %s304 = scalar_lea.vmem [#allocation3], %s303
        // Predicated region
        $region74: #{tpu_custom_call.1} parent=72 // pred_check
          %p305 = pneg %p79
        $region75: #{tpu_custom_call.1} parent=72 // pred_check_branch
          %307 = sbr.rel (%p305) target = $region77
        $region76: #{tpu_custom_call.1} parent=72 // pred_region
          _
        $region77: #{tpu_custom_call.1} parent=72 // pred_fallthru
          _
        %s308 = smul.u32 16, %s23
        %p309 = scmp.lt.s32.totalorder %s308, 31
        %s310 = scalar_select %p309, %s308, 31
        %s311 = smul.addr %s310, 8
        %s312 = scalar_lea.vmem %s0, %s311
        %p313 = pneg %p51
        %p314 = pneg %p48
        %s315 = sand.u32 %s66, 1
        %s316 = sand.u32 %s66, 1
        %s317 = smul.addr %s316, 64
        %s318 = scalar_lea.vmem [#allocation3], %s317
        %p319 = pneg %p79
        %p320 = pneg %p76
        %p321 = pneg %p100
        %p322 = pneg %p97
        %p323 = pneg %p121
        %p324 = pneg %p118
        %p325 = pneg %p147
        %p326 = pneg %p144
        %s327 = sand.u32 %s134, 1
        %s328 = scalar_lea.sflag [#allocation5], %s327
        %s329 = sand.u32 %s134, 1
        %s330 = smul.addr %s329, 128
        %s331 = scalar_lea.vmem [#allocation4], %s330
        %s332 = smul.u32 16, %s23
        %p333 = scmp.lt.s32.totalorder %s332, 31
        %s334 = scalar_select %p333, %s332, 31
        %s335 = smul.addr %s334, 8
        %s336 = scalar_lea.vmem %s0, %s335
        %s337 = smul.u32 16, %s23
        %s338 = smul.u32 16, %s22
        %s339 = smul.u32 16, %s22
        %p340 = scmp.eq.s32.totalorder %s23, 0
        // Predicated region
        $region78: #{tpu_custom_call.1} parent=72 // pred_check
          %p341 = pneg %p340
        $region79: #{tpu_custom_call.1} parent=72 // pred_check_branch
          %343 = sbr.rel (%p341) target = $region81
        $region80: #{tpu_custom_call.1} parent=72 // pred_region
          %344 = vst [vmem:[#allocation2] sm:$0xff] 0.0
          %345 = vst [vmem:[#allocation2 + $0x8] sm:$0xff] 0.0
          %346 = vst [vmem:[#allocation2 + $0x10] sm:$0xff] 0.0
          %347 = vst [vmem:[#allocation2 + $0x18] sm:$0xff] 0.0
          %348 = vst [vmem:[#allocation2 + $0x20] sm:$0xff] 0.0
          %349 = vst [vmem:[#allocation2 + $0x28] sm:$0xff] 0.0
          %350 = vst [vmem:[#allocation2 + $0x30] sm:$0xff] 0.0
          %351 = vst [vmem:[#allocation2 + $0x38] sm:$0xff] 0.0
          %352 = vst [vmem:[#allocation2 + $0x40] sm:$0xff] 0.0
          %353 = vst [vmem:[#allocation2 + $0x48] sm:$0xff] 0.0
          %354 = vst [vmem:[#allocation2 + $0x50] sm:$0xff] 0.0
          %355 = vst [vmem:[#allocation2 + $0x58] sm:$0xff] 0.0
          %356 = vst [vmem:[#allocation2 + $0x60] sm:$0xff] 0.0
          %357 = vst [vmem:[#allocation2 + $0x68] sm:$0xff] 0.0
          %358 = vst [vmem:[#allocation2 + $0x70] sm:$0xff] 0.0
          %359 = vst [vmem:[#allocation2 + $0x78] sm:$0xff] 0.0
        $region81: #{tpu_custom_call.1} parent=72 // pred_fallthru
          _
        %v360 = vld [vmem:[%s336] sm:$0xff]
        %v361 = vld [vmem:[%s336 + $0x8] sm:$0xff]
        %v362 = vld [vmem:[%s336 + $0x10] sm:$0xff]
        %v363 = vld [vmem:[%s336 + $0x18] sm:$0xff]
        %v364 = vld [vmem:[%s336 + $0x20] sm:$0xff]
        %v365 = vld [vmem:[%s336 + $0x28] sm:$0xff]
        %v366 = vld [vmem:[%s336 + $0x30] sm:$0xff]
        %v367 = vld [vmem:[%s336 + $0x38] sm:$0xff]
        %v368 = vld [vmem:[%s336 + $0x40] sm:$0xff]
        %v369 = vld [vmem:[%s336 + $0x48] sm:$0xff]
        %v370 = vld [vmem:[%s336 + $0x50] sm:$0xff]
        %v371 = vld [vmem:[%s336 + $0x58] sm:$0xff]
        %v372 = vld [vmem:[%s336 + $0x60] sm:$0xff]
        %v373 = vld [vmem:[%s336 + $0x68] sm:$0xff]
        %v374 = vld [vmem:[%s336 + $0x70] sm:$0xff]
        %v375 = vld [vmem:[%s336 + $0x78] sm:$0xff]
        %v376 = vld [vmem:[%s2] sm:$0xff]
        %v377 = vld [vmem:[%s2 + $0x8] sm:$0xff]
        %v378 = vld [vmem:[%s2 + $0x10] sm:$0xff]
        %v379 = vld [vmem:[%s2 + $0x18] sm:$0xff]
        %v380 = vld [vmem:[%s2 + $0x20] sm:$0xff]
        %v381 = vld [vmem:[%s2 + $0x28] sm:$0xff]
        %v382 = vld [vmem:[%s2 + $0x30] sm:$0xff]
        %v383 = vld [vmem:[%s2 + $0x38] sm:$0xff]
        %v384 = vld [vmem:[%s3] sm:$0x1]
        %v386 = vperm.slane %v384, 0
        %vm388 = vcmask 523264
        %v390 = vsel %vm388, %v360, 0
        %v393 = vsel %vm388, %v361, 0
        %v396 = vsel %vm388, %v362, 0
        %v399 = vsel %vm388, %v363, 0
        %v402 = vsel %vm388, %v364, 0
        %v405 = vsel %vm388, %v365, 0
        %v408 = vsel %vm388, %v366, 0
        %v411 = vsel %vm388, %v367, 0
        %v414 = vsel %vm388, %v368, 0
        %v417 = vsel %vm388, %v369, 0
        %v420 = vsel %vm388, %v370, 0
        %v423 = vsel %vm388, %v371, 0
        %v426 = vsel %vm388, %v372, 0
        %v429 = vsel %vm388, %v373, 0
        %v432 = vsel %vm388, %v374, 0
        %v435 = vsel %vm388, %v375, 0
        %437 = vmatpush.msra.mxu0 0.0
        %438 = vmatpush.msra.mxu0 0.0
        %439 = vmatpush.msra.mxu0 0.0
        %440 = vmatpush.msra.mxu0 0.0
        %441 = vmatpush.msra.mxu0 0.0
        %442 = vmatpush.msra.mxu0 0.0
        %443 = vmatpush.msra.mxu0 0.0
        %444 = vmatpush.msra.mxu0 0.0
        %445 = vmatpush.msra.mxu0 %v383
        %446 = vmatpush.msra.mxu0 %v382
        %447 = vmatpush.msra.mxu0 %v381
        %448 = vmatpush.msra.mxu0 %v380
        %449 = vmatpush.msra.mxu0 %v379
        %450 = vmatpush.msra.mxu0 %v378
        %451 = vmatpush.msra.mxu0 %v377
        %452 = vmatpush.msra.mxu0 %v376
        %453 = vmatmul.f32.gmra.mxu0 %v390
        %v454 = vpop.f32.mrf.mxu0
        %v455 = vadd.f32 %v386, %v454
        %456 = vmatmul.f32.gmra.mxu0 %v393
        %v457 = vpop.f32.mrf.mxu0
        %v458 = vadd.f32 %v386, %v457
        %459 = vmatmul.f32.gmra.mxu0 %v396
        %v460 = vpop.f32.mrf.mxu0
        %v461 = vadd.f32 %v386, %v460
        %462 = vmatmul.f32.gmra.mxu0 %v399
        %v463 = vpop.f32.mrf.mxu0
        %v464 = vadd.f32 %v386, %v463
        %465 = vmatmul.f32.gmra.mxu0 %v402
        %v466 = vpop.f32.mrf.mxu0
        %v467 = vadd.f32 %v386, %v466
        %468 = vmatmul.f32.gmra.mxu0 %v405
        %v469 = vpop.f32.mrf.mxu0
        %v470 = vadd.f32 %v386, %v469
        %471 = vmatmul.f32.gmra.mxu0 %v408
        %v472 = vpop.f32.mrf.mxu0
        %v473 = vadd.f32 %v386, %v472
        %474 = vmatmul.f32.gmra.mxu0 %v411
        %v475 = vpop.f32.mrf.mxu0
        %v476 = vadd.f32 %v386, %v475
        %477 = vmatmul.f32.gmra.mxu0 %v414
        %v478 = vpop.f32.mrf.mxu0
        %v479 = vadd.f32 %v386, %v478
        %480 = vmatmul.f32.gmra.mxu0 %v417
        %v481 = vpop.f32.mrf.mxu0
        %v482 = vadd.f32 %v386, %v481
        %483 = vmatmul.f32.gmra.mxu0 %v420
        %v484 = vpop.f32.mrf.mxu0
        %v485 = vadd.f32 %v386, %v484
        %486 = vmatmul.f32.gmra.mxu0 %v423
        %v487 = vpop.f32.mrf.mxu0
        %v488 = vadd.f32 %v386, %v487
        %489 = vmatmul.f32.gmra.mxu0 %v426
        %v490 = vpop.f32.mrf.mxu0
        %v491 = vadd.f32 %v386, %v490
        %492 = vmatmul.f32.gmra.mxu0 %v429
        %v493 = vpop.f32.mrf.mxu0
        %v494 = vadd.f32 %v386, %v493
        %495 = vmatmul.f32.gmra.mxu0 %v432
        %v496 = vpop.f32.mrf.mxu0
        %v497 = vadd.f32 %v386, %v496
        %498 = vmatmul.f32.gmra.mxu0 %v435
        %v499 = vpop.f32.mrf.mxu0
        %v500 = vadd.f32 %v386, %v499
        %501 = vdwg.mxu0
        %vm502 = vcmp.gt.f32.partialorder %v455, 0.0
        %vm503 = vcmp.gt.f32.partialorder %v458, 0.0
        %vm504 = vcmp.gt.f32.partialorder %v461, 0.0
        %vm505 = vcmp.gt.f32.partialorder %v464, 0.0
        %vm506 = vcmp.gt.f32.partialorder %v467, 0.0
        %vm507 = vcmp.gt.f32.partialorder %v470, 0.0
        %vm508 = vcmp.gt.f32.partialorder %v473, 0.0
        %vm509 = vcmp.gt.f32.partialorder %v476, 0.0
        %vm510 = vcmp.gt.f32.partialorder %v479, 0.0
        %vm511 = vcmp.gt.f32.partialorder %v482, 0.0
        %vm512 = vcmp.gt.f32.partialorder %v485, 0.0
        %vm513 = vcmp.gt.f32.partialorder %v488, 0.0
        %vm514 = vcmp.gt.f32.partialorder %v491, 0.0
        %vm515 = vcmp.gt.f32.partialorder %v494, 0.0
        %vm516 = vcmp.gt.f32.partialorder %v497, 0.0
        %vm517 = vcmp.gt.f32.partialorder %v500, 0.0
        %v518 = vmul.f32 %v455, 0.01
        %v519 = vmul.f32 %v458, 0.01
        %v520 = vmul.f32 %v461, 0.01
        %v521 = vmul.f32 %v464, 0.01
        %v522 = vmul.f32 %v467, 0.01
        %v523 = vmul.f32 %v470, 0.01
        %v524 = vmul.f32 %v473, 0.01
        %v525 = vmul.f32 %v476, 0.01
        %v526 = vmul.f32 %v479, 0.01
        %v527 = vmul.f32 %v482, 0.01
        %v528 = vmul.f32 %v485, 0.01
        %v529 = vmul.f32 %v488, 0.01
        %v530 = vmul.f32 %v491, 0.01
        %v531 = vmul.f32 %v494, 0.01
        %v532 = vmul.f32 %v497, 0.01
        %v533 = vmul.f32 %v500, 0.01
        %v534 = vsel %vm502, %v455, %v518
        %v535 = vsel %vm503, %v458, %v519
        %v536 = vsel %vm504, %v461, %v520
        %v537 = vsel %vm505, %v464, %v521
        %v538 = vsel %vm506, %v467, %v522
        %v539 = vsel %vm507, %v470, %v523
        %v540 = vsel %vm508, %v473, %v524
        %v541 = vsel %vm509, %v476, %v525
        %v542 = vsel %vm510, %v479, %v526
        %v543 = vsel %vm511, %v482, %v527
        %v544 = vsel %vm512, %v485, %v528
        %v545 = vsel %vm513, %v488, %v529
        %v546 = vsel %vm514, %v491, %v530
        %v547 = vsel %vm515, %v494, %v531
        %v548 = vsel %vm516, %v497, %v532
        %v549 = vsel %vm517, %v500, %v533
        %v550 = vsub.f32 20.0, %v534
        %v551 = vsub.f32 20.0, %v535
        %v552 = vsub.f32 20.0, %v536
        %v553 = vsub.f32 20.0, %v537
        %v554 = vsub.f32 20.0, %v538
        %v555 = vsub.f32 20.0, %v539
        %v556 = vsub.f32 20.0, %v540
        %v557 = vsub.f32 20.0, %v541
        %v558 = vsub.f32 20.0, %v542
        %v559 = vsub.f32 20.0, %v543
        %v560 = vsub.f32 20.0, %v544
        %v561 = vsub.f32 20.0, %v545
        %v562 = vsub.f32 20.0, %v546
        %v563 = vsub.f32 20.0, %v547
        %v564 = vsub.f32 20.0, %v548
        %v565 = vsub.f32 20.0, %v549
        %vm566 = vcmp.gt.f32.partialorder %v550, 0.0
        %vm567 = vcmp.gt.f32.partialorder %v551, 0.0
        %vm568 = vcmp.gt.f32.partialorder %v552, 0.0
        %vm569 = vcmp.gt.f32.partialorder %v553, 0.0
        %vm570 = vcmp.gt.f32.partialorder %v554, 0.0
        %vm571 = vcmp.gt.f32.partialorder %v555, 0.0
        %vm572 = vcmp.gt.f32.partialorder %v556, 0.0
        %vm573 = vcmp.gt.f32.partialorder %v557, 0.0
        %vm574 = vcmp.gt.f32.partialorder %v558, 0.0
        %vm575 = vcmp.gt.f32.partialorder %v559, 0.0
        %vm576 = vcmp.gt.f32.partialorder %v560, 0.0
        %vm577 = vcmp.gt.f32.partialorder %v561, 0.0
        %vm578 = vcmp.gt.f32.partialorder %v562, 0.0
        %vm579 = vcmp.gt.f32.partialorder %v563, 0.0
        %vm580 = vcmp.gt.f32.partialorder %v564, 0.0
        %vm581 = vcmp.gt.f32.partialorder %v565, 0.0
        %v582 = vmul.f32 %v550, 0.01
        %v583 = vmul.f32 %v551, 0.01
        %v584 = vmul.f32 %v552, 0.01
        %v585 = vmul.f32 %v553, 0.01
        %v586 = vmul.f32 %v554, 0.01
        %v587 = vmul.f32 %v555, 0.01
        %v588 = vmul.f32 %v556, 0.01
        %v589 = vmul.f32 %v557, 0.01
        %v590 = vmul.f32 %v558, 0.01
        %v591 = vmul.f32 %v559, 0.01
        %v592 = vmul.f32 %v560, 0.01
        %v593 = vmul.f32 %v561, 0.01
        %v594 = vmul.f32 %v562, 0.01
        %v595 = vmul.f32 %v563, 0.01
        %v596 = vmul.f32 %v564, 0.01
        %v597 = vmul.f32 %v565, 0.01
        %v598 = vsel %vm566, %v550, %v582
        %v599 = vsel %vm567, %v551, %v583
        %v600 = vsel %vm568, %v552, %v584
        %v601 = vsel %vm569, %v553, %v585
        %v602 = vsel %vm570, %v554, %v586
        %v603 = vsel %vm571, %v555, %v587
        %v604 = vsel %vm572, %v556, %v588
        %v605 = vsel %vm573, %v557, %v589
        %v606 = vsel %vm574, %v558, %v590
        %v607 = vsel %vm575, %v559, %v591
        %v608 = vsel %vm576, %v560, %v592
        %v609 = vsel %vm577, %v561, %v593
        %v610 = vsel %vm578, %v562, %v594
        %v611 = vsel %vm579, %v563, %v595
        %v612 = vsel %vm580, %v564, %v596
        %v613 = vsel %vm581, %v565, %v597
        %v614 = vsub.f32 20.0, %v598
        %v615 = vsub.f32 20.0, %v599
        %v616 = vsub.f32 20.0, %v600
        %v617 = vsub.f32 20.0, %v601
        %v618 = vsub.f32 20.0, %v602
        %v619 = vsub.f32 20.0, %v603
        %v620 = vsub.f32 20.0, %v604
        %v621 = vsub.f32 20.0, %v605
        %v622 = vsub.f32 20.0, %v606
        %v623 = vsub.f32 20.0, %v607
        %v624 = vsub.f32 20.0, %v608
        %v625 = vsub.f32 20.0, %v609
        %v626 = vsub.f32 20.0, %v610
        %v627 = vsub.f32 20.0, %v611
        %v628 = vsub.f32 20.0, %v612
        %v629 = vsub.f32 20.0, %v613
        %v630 = vmul.f32 %v614, 1.442695
        %v631 = vpow.pop %v630
        %v632 = vmul.f32 %v615, 1.442695
        %v633 = vpow.pop %v632
        %v634 = vmul.f32 %v616, 1.442695
        %v635 = vpow.pop %v634
        %v636 = vmul.f32 %v617, 1.442695
        %v637 = vpow.pop %v636
        %v638 = vmul.f32 %v618, 1.442695
        %v639 = vpow.pop %v638
        %v640 = vmul.f32 %v619, 1.442695
        %v641 = vpow.pop %v640
        %v642 = vmul.f32 %v620, 1.442695
        %v643 = vpow.pop %v642
        %v644 = vmul.f32 %v621, 1.442695
        %v645 = vpow.pop %v644
        %v646 = vmul.f32 %v622, 1.442695
        %v647 = vpow.pop %v646
        %v648 = vmul.f32 %v623, 1.442695
        %v649 = vpow.pop %v648
        %v650 = vmul.f32 %v624, 1.442695
        %v651 = vpow.pop %v650
        %v652 = vmul.f32 %v625, 1.442695
        %v653 = vpow.pop %v652
        %v654 = vmul.f32 %v626, 1.442695
        %v655 = vpow.pop %v654
        %v656 = vmul.f32 %v627, 1.442695
        %v657 = vpow.pop %v656
        %v658 = vmul.f32 %v628, 1.442695
        %v659 = vpow.pop %v658
        %v660 = vmul.f32 %v629, 1.442695
        %v661 = vpow.pop %v660
        %v662 = vlaneseq
        %v663 = vand.u32 %v662, 127
        %vm664 = vcmp.eq.s32.totalorder %v663, 32
        %666 = vset.pattern.permute.xlu0 32
        %667 = vperm.xlu0 %666, %v631
        %v668 = vpop.permute.xlu0 %667
        %671 = vset.pattern.permute.xlu0 32
        %672 = vperm.xlu0 %671, %v633
        %v673 = vpop.permute.xlu0 %672
        %676 = vset.pattern.permute.xlu0 32
        %677 = vperm.xlu0 %676, %v635
        %v678 = vpop.permute.xlu0 %677
        %681 = vset.pattern.permute.xlu0 32
        %682 = vperm.xlu0 %681, %v637
        %v683 = vpop.permute.xlu0 %682
        %686 = vset.pattern.permute.xlu0 32
        %687 = vperm.xlu0 %686, %v639
        %v688 = vpop.permute.xlu0 %687
        %691 = vset.pattern.permute.xlu0 32
        %692 = vperm.xlu0 %691, %v641
        %v693 = vpop.permute.xlu0 %692
        %696 = vset.pattern.permute.xlu0 32
        %697 = vperm.xlu0 %696, %v643
        %v698 = vpop.permute.xlu0 %697
        %701 = vset.pattern.permute.xlu0 32
        %702 = vperm.xlu0 %701, %v645
        %v703 = vpop.permute.xlu0 %702
        %706 = vset.pattern.permute.xlu0 32
        %707 = vperm.xlu0 %706, %v647
        %v708 = vpop.permute.xlu0 %707
        %711 = vset.pattern.permute.xlu0 32
        %712 = vperm.xlu0 %711, %v649
        %v713 = vpop.permute.xlu0 %712
        %716 = vset.pattern.permute.xlu0 32
        %717 = vperm.xlu0 %716, %v651
        %v718 = vpop.permute.xlu0 %717
        %721 = vset.pattern.permute.xlu0 32
        %722 = vperm.xlu0 %721, %v653
        %v723 = vpop.permute.xlu0 %722
        %726 = vset.pattern.permute.xlu0 32
        %727 = vperm.xlu0 %726, %v655
        %v728 = vpop.permute.xlu0 %727
        %731 = vset.pattern.permute.xlu0 32
        %732 = vperm.xlu0 %731, %v657
        %v733 = vpop.permute.xlu0 %732
        %736 = vset.pattern.permute.xlu0 32
        %737 = vperm.xlu0 %736, %v659
        %v738 = vpop.permute.xlu0 %737
        %741 = vset.pattern.permute.xlu0 32
        %742 = vperm.xlu0 %741, %v661
        %v743 = vpop.permute.xlu0 %742
        %v745 = vmul.f32 %v455, %v668
        %v746 = vmul.f32 %v458, %v673
        %v747 = vmul.f32 %v461, %v678
        %v748 = vmul.f32 %v464, %v683
        %v749 = vmul.f32 %v467, %v688
        %v750 = vmul.f32 %v470, %v693
        %v751 = vmul.f32 %v473, %v698
        %v752 = vmul.f32 %v476, %v703
        %v753 = vmul.f32 %v479, %v708
        %v754 = vmul.f32 %v482, %v713
        %v755 = vmul.f32 %v485, %v718
        %v756 = vmul.f32 %v488, %v723
        %v757 = vmul.f32 %v491, %v728
        %v758 = vmul.f32 %v494, %v733
        %v759 = vmul.f32 %v497, %v738
        %v760 = vmul.f32 %v500, %v743
        %v761 = vsel %vm664, %v668, %v745
        %v762 = vsel %vm664, %v673, %v746
        %v763 = vsel %vm664, %v678, %v747
        %v764 = vsel %vm664, %v683, %v748
        %v765 = vsel %vm664, %v688, %v749
        %v766 = vsel %vm664, %v693, %v750
        %v767 = vsel %vm664, %v698, %v751
        %v768 = vsel %vm664, %v703, %v752
        %v769 = vsel %vm664, %v708, %v753
        %v770 = vsel %vm664, %v713, %v754
        %v771 = vsel %vm664, %v718, %v755
        %v772 = vsel %vm664, %v723, %v756
        %v773 = vsel %vm664, %v728, %v757
        %v774 = vsel %vm664, %v733, %v758
        %v775 = vsel %vm664, %v738, %v759
        %v776 = vsel %vm664, %v743, %v760
        %v777 = vld [vmem:[#allocation2] sm:$0xff]
        %v778 = vld [vmem:[#allocation2 + $0x8] sm:$0xff]
        %v779 = vld [vmem:[#allocation2 + $0x10] sm:$0xff]
        %v780 = vld [vmem:[#allocation2 + $0x18] sm:$0xff]
        %v781 = vld [vmem:[#allocation2 + $0x20] sm:$0xff]
        %v782 = vld [vmem:[#allocation2 + $0x28] sm:$0xff]
        %v783 = vld [vmem:[#allocation2 + $0x30] sm:$0xff]
        %v784 = vld [vmem:[#allocation2 + $0x38] sm:$0xff]
        %v785 = vld [vmem:[#allocation2 + $0x40] sm:$0xff]
        %v786 = vld [vmem:[#allocation2 + $0x48] sm:$0xff]
        %v787 = vld [vmem:[#allocation2 + $0x50] sm:$0xff]
        %v788 = vld [vmem:[#allocation2 + $0x58] sm:$0xff]
        %v789 = vld [vmem:[#allocation2 + $0x60] sm:$0xff]
        %v790 = vld [vmem:[#allocation2 + $0x68] sm:$0xff]
        %v791 = vld [vmem:[#allocation2 + $0x70] sm:$0xff]
        %v792 = vld [vmem:[#allocation2 + $0x78] sm:$0xff]
        %v793 = vld [vmem:[%s304] sm:$0xf]
        %v794 = vld [vmem:[%s304 + $0x4] sm:$0xf]
        %v795 = vld [vmem:[%s304 + $0x8] sm:$0xf]
        %v796 = vld [vmem:[%s304 + $0xc] sm:$0xf]
        %v797 = vld [vmem:[%s304 + $0x10] sm:$0xf]
        %v798 = vld [vmem:[%s304 + $0x14] sm:$0xf]
        %v799 = vld [vmem:[%s304 + $0x18] sm:$0xf]
        %v800 = vld [vmem:[%s304 + $0x1c] sm:$0xf]
        %v801 = vld [vmem:[%s304 + $0x20] sm:$0xf]
        %v802 = vld [vmem:[%s304 + $0x24] sm:$0xf]
        %v803 = vld [vmem:[%s304 + $0x28] sm:$0xf]
        %v804 = vld [vmem:[%s304 + $0x2c] sm:$0xf]
        %v805 = vld [vmem:[%s304 + $0x30] sm:$0xf]
        %v806 = vld [vmem:[%s304 + $0x34] sm:$0xf]
        %v807 = vld [vmem:[%s304 + $0x38] sm:$0xf]
        %v808 = vld [vmem:[%s304 + $0x3c] sm:$0xf]
        %v809 = vpack.c.bf16 %v762, %v761
        %v810 = vpack.c.bf16 %v764, %v763
        %v811 = vpack.c.bf16 %v766, %v765
        %v812 = vpack.c.bf16 %v768, %v767
        %v813 = vpack.c.bf16 %v770, %v769
        %v814 = vpack.c.bf16 %v772, %v771
        %v815 = vpack.c.bf16 %v774, %v773
        %v816 = vpack.c.bf16 %v776, %v775
        %v833 = vunpack.c.l.b16 %v793
        %v834 = vunpack.c.l.b16 %v794
        %v835 = vunpack.c.l.b16 %v795
        %v836 = vunpack.c.l.b16 %v796
        %v837 = vunpack.c.l.b16 %v797
        %v838 = vunpack.c.l.b16 %v798
        %v839 = vunpack.c.l.b16 %v799
        %v840 = vunpack.c.l.b16 %v800
        %v841 = vunpack.c.l.b16 %v801
        %v842 = vunpack.c.l.b16 %v802
        %v843 = vunpack.c.l.b16 %v803
        %v844 = vunpack.c.l.b16 %v804
        %v845 = vunpack.c.l.b16 %v805
        %v846 = vunpack.c.l.b16 %v806
        %v847 = vunpack.c.l.b16 %v807
        %v848 = vunpack.c.l.b16 %v808
        %v849 = vpack.c.b16 %v834, %v833
        %v850 = vpack.c.b16 %v836, %v835
        %v851 = vpack.c.b16 %v838, %v837
        %v852 = vpack.c.b16 %v840, %v839
        %v853 = vpack.c.b16 %v842, %v841
        %v854 = vpack.c.b16 %v844, %v843
        %v855 = vpack.c.b16 %v846, %v845
        %v856 = vpack.c.b16 %v848, %v847
        %865 = vmatpush.bf16.msra.mxu0 %v816
        %866 = vmatpush.bf16.msra.mxu0 %v815
        %867 = vmatpush.bf16.msra.mxu0 %v814
        %868 = vmatpush.bf16.msra.mxu0 %v813
        %869 = vmatpush.bf16.msra.mxu0 %v812
        %870 = vmatpush.bf16.msra.mxu0 %v811
        %871 = vmatpush.bf16.msra.mxu0 %v810
        %872 = vmatpush.bf16.msra.mxu0 %v809
        %873 = vmatmul.bf16.gmra.mxu0 %v849
        %v874 = vpop.f32.mrf.mxu0
        %v875 = vadd.f32 0.0, %v874
        %v876 = vpop.f32.mrf.mxu0
        %v877 = vadd.f32 0.0, %v876
        %878 = vmatmul.bf16.gmra.mxu0 %v850
        %v879 = vpop.f32.mrf.mxu0
        %v880 = vadd.f32 0.0, %v879
        %v881 = vpop.f32.mrf.mxu0
        %v882 = vadd.f32 0.0, %v881
        %883 = vmatmul.bf16.gmra.mxu0 %v851
        %v884 = vpop.f32.mrf.mxu0
        %v885 = vadd.f32 0.0, %v884
        %v886 = vpop.f32.mrf.mxu0
        %v887 = vadd.f32 0.0, %v886
        %888 = vmatmul.bf16.gmra.mxu0 %v852
        %v889 = vpop.f32.mrf.mxu0
        %v890 = vadd.f32 0.0, %v889
        %v891 = vpop.f32.mrf.mxu0
        %v892 = vadd.f32 0.0, %v891
        %893 = vmatmul.bf16.gmra.mxu0 %v853
        %v894 = vpop.f32.mrf.mxu0
        %v895 = vadd.f32 0.0, %v894
        %v896 = vpop.f32.mrf.mxu0
        %v897 = vadd.f32 0.0, %v896
        %898 = vmatmul.bf16.gmra.mxu0 %v854
        %v899 = vpop.f32.mrf.mxu0
        %v900 = vadd.f32 0.0, %v899
        %v901 = vpop.f32.mrf.mxu0
        %v902 = vadd.f32 0.0, %v901
        %903 = vmatmul.bf16.gmra.mxu0 %v855
        %v904 = vpop.f32.mrf.mxu0
        %v905 = vadd.f32 0.0, %v904
        %v906 = vpop.f32.mrf.mxu0
        %v907 = vadd.f32 0.0, %v906
        %908 = vmatmul.bf16.gmra.mxu0 %v856
        %v909 = vpop.f32.mrf.mxu0
        %v910 = vadd.f32 0.0, %v909
        %v911 = vpop.f32.mrf.mxu0
        %v912 = vadd.f32 0.0, %v911
        %913 = vdwg.mxu0
        %v914 = vadd.f32 %v777, %v875
        %v915 = vadd.f32 %v778, %v877
        %v916 = vadd.f32 %v779, %v880
        %v917 = vadd.f32 %v780, %v882
        %v918 = vadd.f32 %v781, %v885
        %v919 = vadd.f32 %v782, %v887
        %v920 = vadd.f32 %v783, %v890
        %v921 = vadd.f32 %v784, %v892
        %v922 = vadd.f32 %v785, %v895
        %v923 = vadd.f32 %v786, %v897
        %v924 = vadd.f32 %v787, %v900
        %v925 = vadd.f32 %v788, %v902
        %v926 = vadd.f32 %v789, %v905
        %v927 = vadd.f32 %v790, %v907
        %v928 = vadd.f32 %v791, %v910
        %v929 = vadd.f32 %v792, %v912
        %930 = vst [vmem:[#allocation2] sm:$0xff] %v914
        %931 = vst [vmem:[#allocation2 + $0x8] sm:$0xff] %v915
        %932 = vst [vmem:[#allocation2 + $0x10] sm:$0xff] %v916
        %933 = vst [vmem:[#allocation2 + $0x18] sm:$0xff] %v917
        %934 = vst [vmem:[#allocation2 + $0x20] sm:$0xff] %v918
        %935 = vst [vmem:[#allocation2 + $0x28] sm:$0xff] %v919
        %936 = vst [vmem:[#allocation2 + $0x30] sm:$0xff] %v920
        %937 = vst [vmem:[#allocation2 + $0x38] sm:$0xff] %v921
        %938 = vst [vmem:[#allocation2 + $0x40] sm:$0xff] %v922
        %939 = vst [vmem:[#allocation2 + $0x48] sm:$0xff] %v923
        %940 = vst [vmem:[#allocation2 + $0x50] sm:$0xff] %v924
        %941 = vst [vmem:[#allocation2 + $0x58] sm:$0xff] %v925
        %942 = vst [vmem:[#allocation2 + $0x60] sm:$0xff] %v926
        %943 = vst [vmem:[#allocation2 + $0x68] sm:$0xff] %v927
        %944 = vst [vmem:[#allocation2 + $0x70] sm:$0xff] %v928
        %945 = vst [vmem:[#allocation2 + $0x78] sm:$0xff] %v929
        %p946 = scmp.eq.s32.totalorder %s23, 1
        // Predicated region
        $region82: #{tpu_custom_call.1} parent=72 // pred_check
          %p947 = pneg %p946
        $region83: #{tpu_custom_call.1} parent=72 // pred_check_branch
          %949 = sbr.rel (%p947) target = $region85
        $region84: #{tpu_custom_call.1} parent=72 // pred_region
          %v950 = vld [vmem:[#allocation2] sm:$0xff]
          %v951 = vld [vmem:[#allocation2 + $0x8] sm:$0xff]
          %v952 = vld [vmem:[#allocation2 + $0x10] sm:$0xff]
          %v953 = vld [vmem:[#allocation2 + $0x18] sm:$0xff]
          %v954 = vld [vmem:[#allocation2 + $0x20] sm:$0xff]
          %v955 = vld [vmem:[#allocation2 + $0x28] sm:$0xff]
          %v956 = vld [vmem:[#allocation2 + $0x30] sm:$0xff]
          %v957 = vld [vmem:[#allocation2 + $0x38] sm:$0xff]
          %v958 = vld [vmem:[#allocation2 + $0x40] sm:$0xff]
          %v959 = vld [vmem:[#allocation2 + $0x48] sm:$0xff]
          %v960 = vld [vmem:[#allocation2 + $0x50] sm:$0xff]
          %v961 = vld [vmem:[#allocation2 + $0x58] sm:$0xff]
          %v962 = vld [vmem:[#allocation2 + $0x60] sm:$0xff]
          %v963 = vld [vmem:[#allocation2 + $0x68] sm:$0xff]
          %v964 = vld [vmem:[#allocation2 + $0x70] sm:$0xff]
          %v965 = vld [vmem:[#allocation2 + $0x78] sm:$0xff]
          %v966 = vmax.f32 %v950, 1e-20
          %v967 = vmax.f32 %v951, 1e-20
          %v968 = vmax.f32 %v952, 1e-20
          %v969 = vmax.f32 %v953, 1e-20
          %v970 = vmax.f32 %v954, 1e-20
          %v971 = vmax.f32 %v955, 1e-20
          %v972 = vmax.f32 %v956, 1e-20
          %v973 = vmax.f32 %v957, 1e-20
          %v974 = vmax.f32 %v958, 1e-20
          %v975 = vmax.f32 %v959, 1e-20
          %v976 = vmax.f32 %v960, 1e-20
          %v977 = vmax.f32 %v961, 1e-20
          %v978 = vmax.f32 %v962, 1e-20
          %v979 = vmax.f32 %v963, 1e-20
          %v980 = vmax.f32 %v964, 1e-20
          %v981 = vmax.f32 %v965, 1e-20
          %v982 = vrcp.pop %v966
          %v983 = vrcp.pop %v967
          %v984 = vrcp.pop %v968
          %v985 = vrcp.pop %v969
          %v986 = vrcp.pop %v970
          %v987 = vrcp.pop %v971
          %v988 = vrcp.pop %v972
          %v989 = vrcp.pop %v973
          %v990 = vrcp.pop %v974
          %v991 = vrcp.pop %v975
          %v992 = vrcp.pop %v976
          %v993 = vrcp.pop %v977
          %v994 = vrcp.pop %v978
          %v995 = vrcp.pop %v979
          %v996 = vrcp.pop %v980
          %v997 = vrcp.pop %v981
          %999 = vset.pattern.permute.xlu0 32
          %1000 = vperm.xlu0 %999, %v982
          %v1001 = vpop.permute.xlu0 %1000
          %1004 = vset.pattern.permute.xlu0 32
          %1005 = vperm.xlu0 %1004, %v983
          %v1006 = vpop.permute.xlu0 %1005
          %1009 = vset.pattern.permute.xlu0 32
          %1010 = vperm.xlu0 %1009, %v984
          %v1011 = vpop.permute.xlu0 %1010
          %1014 = vset.pattern.permute.xlu0 32
          %1015 = vperm.xlu0 %1014, %v985
          %v1016 = vpop.permute.xlu0 %1015
          %1019 = vset.pattern.permute.xlu0 32
          %1020 = vperm.xlu0 %1019, %v986
          %v1021 = vpop.permute.xlu0 %1020
          %1024 = vset.pattern.permute.xlu0 32
          %1025 = vperm.xlu0 %1024, %v987
          %v1026 = vpop.permute.xlu0 %1025
          %1029 = vset.pattern.permute.xlu0 32
          %1030 = vperm.xlu0 %1029, %v988
          %v1031 = vpop.permute.xlu0 %1030
          %1034 = vset.pattern.permute.xlu0 32
          %1035 = vperm.xlu0 %1034, %v989
          %v1036 = vpop.permute.xlu0 %1035
          %1039 = vset.pattern.permute.xlu0 32
          %1040 = vperm.xlu0 %1039, %v990
          %v1041 = vpop.permute.xlu0 %1040
          %1044 = vset.pattern.permute.xlu0 32
          %1045 = vperm.xlu0 %1044, %v991
          %v1046 = vpop.permute.xlu0 %1045
          %1049 = vset.pattern.permute.xlu0 32
          %1050 = vperm.xlu0 %1049, %v992
          %v1051 = vpop.permute.xlu0 %1050
          %1054 = vset.pattern.permute.xlu0 32
          %1055 = vperm.xlu0 %1054, %v993
          %v1056 = vpop.permute.xlu0 %1055
          %1059 = vset.pattern.permute.xlu0 32
          %1060 = vperm.xlu0 %1059, %v994
          %v1061 = vpop.permute.xlu0 %1060
          %1064 = vset.pattern.permute.xlu0 32
          %1065 = vperm.xlu0 %1064, %v995
          %v1066 = vpop.permute.xlu0 %1065
          %1069 = vset.pattern.permute.xlu0 32
          %1070 = vperm.xlu0 %1069, %v996
          %v1071 = vpop.permute.xlu0 %1070
          %1074 = vset.pattern.permute.xlu0 32
          %1075 = vperm.xlu0 %1074, %v997
          %v1076 = vpop.permute.xlu0 %1075
          %v1078 = vmul.f32 %v950, %v1001
          %v1079 = vmul.f32 %v951, %v1006
          %v1080 = vmul.f32 %v952, %v1011
          %v1081 = vmul.f32 %v953, %v1016
          %v1082 = vmul.f32 %v954, %v1021
          %v1083 = vmul.f32 %v955, %v1026
          %v1084 = vmul.f32 %v956, %v1031
          %v1085 = vmul.f32 %v957, %v1036
          %v1086 = vmul.f32 %v958, %v1041
          %v1087 = vmul.f32 %v959, %v1046
          %v1088 = vmul.f32 %v960, %v1051
          %v1089 = vmul.f32 %v961, %v1056
          %v1090 = vmul.f32 %v962, %v1061
          %v1091 = vmul.f32 %v963, %v1066
          %v1092 = vmul.f32 %v964, %v1071
          %v1093 = vmul.f32 %v965, %v1076
          %vm1094 = vcmp.gt.f32.partialorder %v1078, 0.0
          %vm1095 = vcmp.gt.f32.partialorder %v1079, 0.0
          %vm1096 = vcmp.gt.f32.partialorder %v1080, 0.0
          %vm1097 = vcmp.gt.f32.partialorder %v1081, 0.0
          %vm1098 = vcmp.gt.f32.partialorder %v1082, 0.0
          %vm1099 = vcmp.gt.f32.partialorder %v1083, 0.0
          %vm1100 = vcmp.gt.f32.partialorder %v1084, 0.0
          %vm1101 = vcmp.gt.f32.partialorder %v1085, 0.0
          %vm1102 = vcmp.gt.f32.partialorder %v1086, 0.0
          %vm1103 = vcmp.gt.f32.partialorder %v1087, 0.0
          %vm1104 = vcmp.gt.f32.partialorder %v1088, 0.0
          %vm1105 = vcmp.gt.f32.partialorder %v1089, 0.0
          %vm1106 = vcmp.gt.f32.partialorder %v1090, 0.0
          %vm1107 = vcmp.gt.f32.partialorder %v1091, 0.0
          %vm1108 = vcmp.gt.f32.partialorder %v1092, 0.0
          %vm1109 = vcmp.gt.f32.partialorder %v1093, 0.0
          %v1110 = vmul.f32 %v1078, 0.01
          %v1111 = vmul.f32 %v1079, 0.01
          %v1112 = vmul.f32 %v1080, 0.01
          %v1113 = vmul.f32 %v1081, 0.01
          %v1114 = vmul.f32 %v1082, 0.01
          %v1115 = vmul.f32 %v1083, 0.01
          %v1116 = vmul.f32 %v1084, 0.01
          %v1117 = vmul.f32 %v1085, 0.01
          %v1118 = vmul.f32 %v1086, 0.01
          %v1119 = vmul.f32 %v1087, 0.01
          %v1120 = vmul.f32 %v1088, 0.01
          %v1121 = vmul.f32 %v1089, 0.01
          %v1122 = vmul.f32 %v1090, 0.01
          %v1123 = vmul.f32 %v1091, 0.01
          %v1124 = vmul.f32 %v1092, 0.01
          %v1125 = vmul.f32 %v1093, 0.01
          %v1126 = vsel %vm1094, %v1078, %v1110
          %v1127 = vsel %vm1095, %v1079, %v1111
          %v1128 = vsel %vm1096, %v1080, %v1112
          %v1129 = vsel %vm1097, %v1081, %v1113
          %v1130 = vsel %vm1098, %v1082, %v1114
          %v1131 = vsel %vm1099, %v1083, %v1115
          %v1132 = vsel %vm1100, %v1084, %v1116
          %v1133 = vsel %vm1101, %v1085, %v1117
          %v1134 = vsel %vm1102, %v1086, %v1118
          %v1135 = vsel %vm1103, %v1087, %v1119
          %v1136 = vsel %vm1104, %v1088, %v1120
          %v1137 = vsel %vm1105, %v1089, %v1121
          %v1138 = vsel %vm1106, %v1090, %v1122
          %v1139 = vsel %vm1107, %v1091, %v1123
          %v1140 = vsel %vm1108, %v1092, %v1124
          %v1141 = vsel %vm1109, %v1093, %v1125
          %1142 = vst [vmem:[%s331] sm:$0xff] %v1126
          %1143 = vst [vmem:[%s331 + $0x8] sm:$0xff] %v1127
          %1144 = vst [vmem:[%s331 + $0x10] sm:$0xff] %v1128
          %1145 = vst [vmem:[%s331 + $0x18] sm:$0xff] %v1129
          %1146 = vst [vmem:[%s331 + $0x20] sm:$0xff] %v1130
          %1147 = vst [vmem:[%s331 + $0x28] sm:$0xff] %v1131
          %1148 = vst [vmem:[%s331 + $0x30] sm:$0xff] %v1132
          %1149 = vst [vmem:[%s331 + $0x38] sm:$0xff] %v1133
          %1150 = vst [vmem:[%s331 + $0x40] sm:$0xff] %v1134
          %1151 = vst [vmem:[%s331 + $0x48] sm:$0xff] %v1135
          %1152 = vst [vmem:[%s331 + $0x50] sm:$0xff] %v1136
          %1153 = vst [vmem:[%s331 + $0x58] sm:$0xff] %v1137
          %1154 = vst [vmem:[%s331 + $0x60] sm:$0xff] %v1138
          %1155 = vst [vmem:[%s331 + $0x68] sm:$0xff] %v1139
          %1156 = vst [vmem:[%s331 + $0x70] sm:$0xff] %v1140
          %1157 = vst [vmem:[%s331 + $0x78] sm:$0xff] %v1141
        $region85: #{tpu_custom_call.1} parent=72 // pred_fallthru
          _
        %s1158 = sand.u32 %s134, 1
        %s1159 = scalar_lea.sflag [#allocation5], %s1158
        %s1160 = sand.u32 %s134, 1
        %s1161 = smul.addr %s1160, 128
        %s1162 = scalar_lea.vmem [#allocation4], %s1161
        // Predicated region
        $region86: #{tpu_custom_call.1} parent=72 // pred_check
          %p1163 = pneg %p144
        $region87: #{tpu_custom_call.1} parent=72 // pred_check_branch
          %1165 = sbr.rel (%p1163) target = $region89
        $region88: #{tpu_custom_call.1} parent=72 // pred_region
          %s1166 = smul.u32 16, %s22
          %1168 = vsyncadd %s1159, 0
          %s1169 = smul.addr %s1166, 8
          %s1170 = scalar_lea.hbm %s4, %s1169
          %s1171 = sshll.u32 %s1162, 4
          %s1172 = int_to_ptr.vmem [resolvable:$true] %s1171
          %s1173 = sshll.u32 %s1170, 4
          %s1174 = int_to_ptr.hbm [resolvable:$true] %s1173
          %1179 = dma.vmem_to_hbm [thread:$0]  %s1172, 2048, %s1174, %s1159, 128, 128, 8
        $region89: #{tpu_custom_call.1} parent=72 // pred_fallthru
          _
      $region73: #{tpu_custom_call.1} parent=5 // pred_fallthru
        _
      %p1180 = scmp.le.s32.totalorder 2, %s13
      // Predicated region
      $region90: #{tpu_custom_call.1} parent=5 // pred_check
        %p1181 = pneg %p1180
      $region91: #{tpu_custom_call.1} parent=5 // pred_check_branch
        %1183 = sbr.rel (%p1181) target = $region93
      $region92: #{tpu_custom_call.1} parent=5 // pred_region
        %s1184 = ssub.s32 %s13, 2
        // Predicated region
        $region94: #{tpu_custom_call.1} parent=92 // pred_check
          %p1185 = pneg %p150
        $region95: #{tpu_custom_call.1} parent=92 // pred_check_branch
          %1187 = sbr.rel (%p1185) target = $region97
        $region96: #{tpu_custom_call.1} parent=92 // pred_region
          %s1188 = sand.u32 %s135, 1
          %s1189 = scalar_lea.sflag [#allocation5], %s1188
          %s1190 = sand.u32 %s135, 1
          %s1191 = smul.addr %s1190, 128
          %s1192 = scalar_lea.vmem [#allocation4], %s1191
          %1194 = dma.done %s1189, 2048
        $region97: #{tpu_custom_call.1} parent=92 // pred_fallthru
          _
      $region93: #{tpu_custom_call.1} parent=5 // pred_fallthru
        _
    $region6: #{tpu_custom_call.1} parent=1 // loop_footer
      %s17 = sadd.s32 1, %s13
    $region7: #{tpu_custom_call.1} parent=1 // loop_footer_branch
      %12 = sbr.rel target = $region3
    $region8: #{tpu_custom_call.1} parent=1 // loop_exit
      _
    %1195 = vsyncpa [#allocation5], 1
    %s1196 = scalar_lea.sflag [#allocation5], 1
    %1197 = vsyncpa %s1196, 1

</llo_original>
